<compile_context>
chip_gen: v7x
topology: tpu7x:2x2x1
jax: 0.10.0
libtpu: 0.0.40
codegen_flags: <defaults>
</compile_context>

<pallas_src>
import math

import jax
import jax.numpy as jnp
from jax.experimental import pallas as pl
from jax.experimental.pallas import tpu as pltpu


def _round_up(n, m):
    return ((n + m - 1) // m) * m


# ----------------------------------------------------------------------------
# Pallas kernel: split first-layer matmul + fused (matmul, bias, tanh) chain.
# ----------------------------------------------------------------------------
def _make_mlp_decoder_kernel(num_layers, out_dims_padded):
    """out_dims_padded: per-layer padded output widths (multiples of 128)."""

    def kernel(pobs_ref, x_ref, w1a_ref, w1b_ref, b_ref, *rest):
        out_ref = rest[-1]
        w_refs = rest[:-1]                      # layers 2..L (bf16, padded)

        b_all = b_ref[...]                      # (L, Hmax_pad) f32, zero-padded

        # ---- layer 1: split matmul replaces the lane-axis concat -----------
        pobs = pobs_ref[...].astype(jnp.bfloat16)
        xin = x_ref[...].astype(jnp.bfloat16)
        acc = jnp.dot(pobs, w1a_ref[...], preferred_element_type=jnp.float32)
        acc = acc + jnp.dot(xin, w1b_ref[...], preferred_element_type=jnp.float32)
        h = jnp.tanh(acc + b_all[0:1, : out_dims_padded[0]])     # f32 VPU/EUP

        # ---- layers 2..L (padded activation columns stay exactly 0) ---------
        for i in range(1, num_layers):
            w = w_refs[i - 1][...]                               # bf16 (Kp, Np)
            acc = jnp.dot(h.astype(jnp.bfloat16), w,
                          preferred_element_type=jnp.float32)
            h = jnp.tanh(acc + b_all[i:i + 1, : out_dims_padded[i]])

        out_ref[...] = h                        # f32, lane-dense (tm, H_last_pad)

    return kernel


# ----------------------------------------------------------------------------
# One-time parameter packing: pad / split / cast weights, pack biases.
# ----------------------------------------------------------------------------
def pack_mlp_params(params, p_dim, x_dim, compute_dtype=jnp.bfloat16):
    """params: list of (W, b) with W shape (in, out) f32, b shape (1, out) f32."""
    num_layers = len(params)
    assert params[0][0].shape[0] == p_dim + x_dim

    out_dims = [int(w.shape[1]) for (w, _) in params]
    out_dims_pad = [_round_up(d, 128) for d in out_dims]
    h_max = max(out_dims_pad)

    # layer 1: split rows of W1 into the partial_obs part and the x part
    w1, _ = params[0]
    w1a = jnp.zeros((p_dim, out_dims_pad[0]), jnp.float32)
    w1a = w1a.at[:, : out_dims[0]].set(w1[:p_dim]).astype(compute_dtype)
    w1b = jnp.zeros((x_dim, out_dims_pad[0]), jnp.float32)
    w1b = w1b.at[:, : out_dims[0]].set(w1[p_dim:]).astype(compute_dtype)

    # layers 2..L: zero-pad both dims
    mid_ws = []
    for i in range(1, num_layers):
        w, _ = params[i]
        wp = jnp.zeros((out_dims_pad[i - 1], out_dims_pad[i]), jnp.float32)
        wp = wp.at[: w.shape[0], : w.shape[1]].set(w)
        mid_ws.append(wp.astype(compute_dtype))

    # all biases packed into a single (L, h_max) f32 array (one DMA, not L)
    b_pack = jnp.zeros((num_layers, h_max), jnp.float32)
    for i, (_, b) in enumerate(params):
        b_pack = b_pack.at[i, : out_dims[i]].set(jnp.reshape(b, (-1,)))

    packed = (w1a, w1b, b_pack, tuple(mid_ws))
    meta = dict(num_layers=num_layers, out_dims=tuple(out_dims),
                out_dims_pad=tuple(out_dims_pad), p_dim=p_dim, x_dim=x_dim)
    return packed, meta


# ----------------------------------------------------------------------------
# Wrapper: batch padding / tiling + pallas_call.
# ----------------------------------------------------------------------------
def mlp_decoder_with_obs_forward(x, partial_obs, packed, meta):
    w1a, w1b, b_pack, mid_ws = packed
    num_layers = meta["num_layers"]
    out_dims = meta["out_dims"]
    out_dims_pad = meta["out_dims_pad"]
    p_dim = meta["p_dim"]
    x_dim = meta["x_dim"]

    batch = x.shape[0]
    assert x.shape[1] == x_dim and partial_obs.shape[1] == p_dim

    # ---- batch tiling: pad to sublane-aligned tile, grid over batch ----------
    b_pad8 = _round_up(batch, 8)
    tm = 128 if b_pad8 >= 128 else b_pad8
    b_pad = _round_up(b_pad8, tm)
    pobs_p = jnp.pad(partial_obs.astype(jnp.float32),
                     ((0, b_pad - batch), (0, 0)))
    x_p = jnp.pad(x.astype(jnp.float32), ((0, b_pad - batch), (0, 0)))

    grid = (b_pad // tm,)
    kernel = _make_mlp_decoder_kernel(num_layers, tuple(out_dims_pad))
    inputs = [pobs_p, x_p, w1a, w1b, b_pack] + list(mid_ws)

    def _resident(shape):
        # full-array block, constant index_map -> stays in VMEM across grid steps
        return pl.BlockSpec(shape, lambda i: (0, 0))

    in_specs = [
        pl.BlockSpec((tm, p_dim), lambda i: (i, 0)),
        pl.BlockSpec((tm, x_dim), lambda i: (i, 0)),
        _resident(w1a.shape),
        _resident(w1b.shape),
        _resident(b_pack.shape),
    ] + [_resident(w.shape) for w in mid_ws]

    out_specs = pl.BlockSpec((tm, out_dims_pad[-1]), lambda i: (i, 0))

    # advisory cost estimate for the XLA scheduler (kernel is small / latency-bound)
    flops = 2 * b_pad * ((p_dim + x_dim) * out_dims_pad[0]
                         + sum(out_dims_pad[i - 1] * out_dims_pad[i]
                               for i in range(1, num_layers)))
    transcendentals = b_pad * sum(out_dims_pad)
    bytes_accessed = (sum(int(a.size) * a.dtype.itemsize for a in inputs)
                      + b_pad * out_dims_pad[-1] * 4)
    cost = pl.CostEstimate(flops=flops, transcendentals=transcendentals,
                           bytes_accessed=bytes_accessed)

    # VMEM budget: resident weights/biases + double-buffered activation tiles,
    # with headroom; cap at the smallest physical VMEM (v7x: 64 MiB).
    resident_bytes = sum(int(a.size) * a.dtype.itemsize for a in inputs[2:])
    stream_bytes = 2 * 2 * tm * (p_dim + x_dim + out_dims_pad[-1]) * 4
    vmem_limit = int(min(64 * 1024 * 1024,
                         max(32 * 1024 * 1024,
                             2 * (resident_bytes + stream_bytes))))

    out_padded = pl.pallas_call(
        kernel,
        out_shape=jax.ShapeDtypeStruct((b_pad, out_dims_pad[-1]), jnp.float32),
        grid=grid,
        in_specs=in_specs,
        out_specs=out_specs,
        compiler_params=pltpu.CompilerParams(
            dimension_semantics=("parallel",),
            vmem_limit_bytes=vmem_limit,
        ),
        cost_estimate=cost,
    )(*inputs)

    # slice off batch and lane padding outside the kernel
    return out_padded[:batch, : out_dims[-1]]


# ----------------------------------------------------------------------------
# Deterministic parameter init (mirrors init_: orthogonal gain=sqrt(2), bias=0)
# ----------------------------------------------------------------------------
def orthogonal_init(key, out_features, in_features, gain):
    rows, cols = out_features, in_features
    n_max, n_min = max(rows, cols), min(rows, cols)
    a = jax.random.normal(key, (n_max, n_min), dtype=jnp.float32)
    q, r = jnp.linalg.qr(a)
    q = q * jnp.sign(jnp.diag(r))            # make decomposition unique
    if rows < cols:
        q = q.T
    return gain * q[:rows, :cols]            # PyTorch layout: (out, in)


def build_params(key, num_inputs, len_indices, hidden_size, num_hidden_layers,
                 last_hidden_size=-1):
    # merge_mode='concat' => input_size = num_inputs + len_indices
    input_size = num_inputs + len_indices
    if last_hidden_size == -1:
        last_hidden_size = hidden_size

    dims = [input_size]
    dims += [hidden_size] * (num_hidden_layers - 1)
    dims += [last_hidden_size]

    gain = math.sqrt(2.0)
    params = []
    for i in range(num_hidden_layers):
        key, sub = jax.random.split(key)
        w_pt = orthogonal_init(sub, dims[i + 1], dims[i], gain)   # (out, in)
        w = jnp.asarray(w_pt.T, dtype=jnp.float32)                # (in, out)
        b = jnp.zeros((1, dims[i + 1]), dtype=jnp.float32)        # bias = 0
        params.append((w, b))
    return params


# ----------------------------------------------------------------------------
# Pure-JAX references.
# ----------------------------------------------------------------------------
def reference_forward_f32(x, partial_obs, params):
    h = jnp.concatenate([partial_obs, x], axis=-1)
    for (w, b) in params:
        h = jnp.tanh(h @ w + jnp.reshape(b, (1, -1)))
    return h


def reference_forward_mixed(x, partial_obs, params):
    # mimics the kernel's dtype strategy: bf16 MXU operands, f32 accumulate,
    # f32 bias add + tanh
    h = jnp.concatenate([partial_obs, x], axis=-1)
    for (w, b) in params:
        acc = jnp.dot(h.astype(jnp.bfloat16), w.astype(jnp.bfloat16),
                      preferred_element_type=jnp.float32)
        h = jnp.tanh(acc + jnp.reshape(b, (1, -1)))
    return h


if __name__ == "__main__":
    # Module hyperparameters (small, consistent with the forward):
    batch = 16
    num_inputs = 16        # feature dim of x
    len_indices = 8        # feature dim of partial_obs
    hidden_size = 32
    num_hidden_layers = 3  # Linear+tanh x3 (last_nonlinearity=True)

    key = jax.random.PRNGKey(0)
    k_x, k_obs, k_params = jax.random.split(key, 3)

    x = jax.random.normal(k_x, (batch, num_inputs), dtype=jnp.float32)
    partial_obs = jax.random.normal(k_obs, (batch, len_indices), dtype=jnp.float32)

    params = build_params(k_params, num_inputs, len_indices,
                          hidden_size, num_hidden_layers)

    # one-time weight packing (padding / bf16 cast / bias packing)
    packed, meta = pack_mlp_params(params, p_dim=len_indices, x_dim=num_inputs)

    out = jax.block_until_ready(
        mlp_decoder_with_obs_forward(x, partial_obs, packed, meta))

    ref_mixed = reference_forward_mixed(x, partial_obs, params)
    ref_f32 = reference_forward_f32(x, partial_obs, params)

    assert out.shape == (batch, hidden_size)
    assert jnp.allclose(out, ref_mixed, rtol=2e-2, atol=2e-2), \
        "mismatch vs mixed-precision reference"
    assert jnp.allclose(out, ref_f32, rtol=5e-2, atol=5e-2), \
        "mismatch vs f32 reference"

    # TODO(synk): merge_mode='bilinear' (get_bilinear outer-product concat) not
    # implemented; this kernel covers the default merge_mode='concat' path.

    print("KERNEL_OK")
</pallas_src>

<mosaic_0001>
module attributes {stable_mosaic.version = 11 : i64} {
  func.func @kernel(%arg0: i32, %arg1: memref<16x8xf32, #tpu.memory_space<vmem>>, %arg2: memref<16x16xf32, #tpu.memory_space<vmem>>, %arg3: memref<8x128xbf16, #tpu.memory_space<vmem>>, %arg4: memref<16x128xbf16, #tpu.memory_space<vmem>>, %arg5: memref<3x128xf32, #tpu.memory_space<vmem>>, %arg6: memref<128x128xbf16, #tpu.memory_space<vmem>>, %arg7: memref<128x128xbf16, #tpu.memory_space<vmem>>, %arg8: memref<16x128xf32, #tpu.memory_space<vmem>>) attributes {dimension_semantics = [#tpu.dimension_semantics<parallel>], iteration_bounds = array<i64: 1>, scalar_prefetch = 0 : i64, scratch_operands = 0 : i64, tpu.core_type = #tpu.core_type<tc>, window_params = [{transform_indices = @transform_0, window_bounds = array<i64: 16, 8>}, {transform_indices = @transform_1, window_bounds = array<i64: 16, 16>}, {pipeline_mode = #tpu.pipeline_mode<synchronous>, transform_indices = @transform_2, window_bounds = array<i64: 8, 128>}, {pipeline_mode = #tpu.pipeline_mode<synchronous>, transform_indices = @transform_3, window_bounds = array<i64: 16, 128>}, {pipeline_mode = #tpu.pipeline_mode<synchronous>, transform_indices = @transform_4, window_bounds = array<i64: 3, 128>}, {pipeline_mode = #tpu.pipeline_mode<synchronous>, transform_indices = @transform_5, window_bounds = array<i64: 128, 128>}, {pipeline_mode = #tpu.pipeline_mode<synchronous>, transform_indices = @transform_6, window_bounds = array<i64: 128, 128>}, {transform_indices = @transform_7, window_bounds = array<i64: 16, 128>}]} {
    %c0 = arith.constant 0 : index
    %c0_0 = arith.constant 0 : index
    %0 = vector.load %arg5[%c0, %c0_0] : memref<3x128xf32, #tpu.memory_space<vmem>>, vector<3x128xf32>
    %c0_1 = arith.constant 0 : index
    %c0_2 = arith.constant 0 : index
    %1 = vector.load %arg1[%c0_1, %c0_2] : memref<16x8xf32, #tpu.memory_space<vmem>>, vector<16x8xf32>
    %2 = arith.truncf %1 : vector<16x8xf32> to vector<16x8xbf16>
    %c0_3 = arith.constant 0 : index
    %c0_4 = arith.constant 0 : index
    %3 = vector.load %arg2[%c0_3, %c0_4] : memref<16x16xf32, #tpu.memory_space<vmem>>, vector<16x16xf32>
    %4 = arith.truncf %3 : vector<16x16xf32> to vector<16x16xbf16>
    %c0_5 = arith.constant 0 : index
    %c0_6 = arith.constant 0 : index
    %5 = vector.load %arg3[%c0_5, %c0_6] : memref<8x128xbf16, #tpu.memory_space<vmem>>, vector<8x128xbf16>
    %cst = arith.constant dense<0.000000e+00> : vector<16x128xf32>
    %6 = tpu.matmul %2, %5, %cst {dimension_numbers = #tpu.dot_dimension_numbers<[1], [0], [0], [1], [0, 0, 1, 1], [], []>} : vector<16x8xbf16>, vector<8x128xbf16>, vector<16x128xf32> -> vector<16x128xf32>
    %c0_7 = arith.constant 0 : index
    %c0_8 = arith.constant 0 : index
    %7 = vector.load %arg4[%c0_7, %c0_8] : memref<16x128xbf16, #tpu.memory_space<vmem>>, vector<16x128xbf16>
    %cst_9 = arith.constant dense<0.000000e+00> : vector<16x128xf32>
    %8 = tpu.matmul %4, %7, %cst_9 {dimension_numbers = #tpu.dot_dimension_numbers<[1], [0], [0], [1], [0, 0, 1, 1], [], []>} : vector<16x16xbf16>, vector<16x128xbf16>, vector<16x128xf32> -> vector<16x128xf32>
    %9 = arith.addf %6, %8 : vector<16x128xf32>
    %10 = vector.extract_strided_slice %0 {offsets = [0, 0], sizes = [1, 128], strides = [1, 1]} : vector<3x128xf32> to vector<1x128xf32>
    %11 = vector.broadcast %10 : vector<1x128xf32> to vector<16x128xf32>
    %12 = arith.addf %9, %11 : vector<16x128xf32>
    %13 = math.tanh %12 : vector<16x128xf32>
    %c0_10 = arith.constant 0 : index
    %c0_11 = arith.constant 0 : index
    %14 = vector.load %arg6[%c0_10, %c0_11] : memref<128x128xbf16, #tpu.memory_space<vmem>>, vector<128x128xbf16>
    %15 = arith.truncf %13 : vector<16x128xf32> to vector<16x128xbf16>
    %cst_12 = arith.constant dense<0.000000e+00> : vector<16x128xf32>
    %16 = tpu.matmul %15, %14, %cst_12 {dimension_numbers = #tpu.dot_dimension_numbers<[1], [0], [0], [1], [0, 0, 1, 1], [], []>} : vector<16x128xbf16>, vector<128x128xbf16>, vector<16x128xf32> -> vector<16x128xf32>
    %17 = vector.extract_strided_slice %0 {offsets = [1, 0], sizes = [1, 128], strides = [1, 1]} : vector<3x128xf32> to vector<1x128xf32>
    %18 = vector.broadcast %17 : vector<1x128xf32> to vector<16x128xf32>
    %19 = arith.addf %16, %18 : vector<16x128xf32>
    %20 = math.tanh %19 : vector<16x128xf32>
    %c0_13 = arith.constant 0 : index
    %c0_14 = arith.constant 0 : index
    %21 = vector.load %arg7[%c0_13, %c0_14] : memref<128x128xbf16, #tpu.memory_space<vmem>>, vector<128x128xbf16>
    %22 = arith.truncf %20 : vector<16x128xf32> to vector<16x128xbf16>
    %cst_15 = arith.constant dense<0.000000e+00> : vector<16x128xf32>
    %23 = tpu.matmul %22, %21, %cst_15 {dimension_numbers = #tpu.dot_dimension_numbers<[1], [0], [0], [1], [0, 0, 1, 1], [], []>} : vector<16x128xbf16>, vector<128x128xbf16>, vector<16x128xf32> -> vector<16x128xf32>
    %24 = vector.extract_strided_slice %0 {offsets = [2, 0], sizes = [1, 128], strides = [1, 1]} : vector<3x128xf32> to vector<1x128xf32>
    %25 = vector.broadcast %24 : vector<1x128xf32> to vector<16x128xf32>
    %26 = arith.addf %23, %25 : vector<16x128xf32>
    %27 = math.tanh %26 : vector<16x128xf32>
    %c0_16 = arith.constant 0 : index
    %c0_17 = arith.constant 0 : index
    %28 = vector.load %arg8[%c0_16, %c0_17] : memref<16x128xf32, #tpu.memory_space<vmem>>, vector<16x128xf32>
    tpu.vector_store %arg8[%c0_16, %c0_17], %27 {strides = array<i32>} : memref<16x128xf32, #tpu.memory_space<vmem>>, vector<16x128xf32>,
    return
  }
  func.func @transform_0(%arg0: i32) -> (i32, i32) {
    %c0_i32 = arith.constant 0 : i32
    %c0_i32_0 = arith.constant 0 : i32
    return %arg0, %c0_i32 : i32, i32
  }
  func.func @transform_1(%arg0: i32) -> (i32, i32) {
    %c0_i32 = arith.constant 0 : i32
    %c0_i32_0 = arith.constant 0 : i32
    return %arg0, %c0_i32 : i32, i32
  }
  func.func @transform_2(%arg0: i32) -> (i32, i32) {
    %c0_i32 = arith.constant 0 : i32
    %c0_i32_0 = arith.constant 0 : i32
    %c0_i32_1 = arith.constant 0 : i32
    return %c0_i32, %c0_i32_0 : i32, i32
  }
  func.func @transform_3(%arg0: i32) -> (i32, i32) {
    %c0_i32 = arith.constant 0 : i32
    %c0_i32_0 = arith.constant 0 : i32
    %c0_i32_1 = arith.constant 0 : i32
    return %c0_i32, %c0_i32_0 : i32, i32
  }
  func.func @transform_4(%arg0: i32) -> (i32, i32) {
    %c0_i32 = arith.constant 0 : i32
    %c0_i32_0 = arith.constant 0 : i32
    %c0_i32_1 = arith.constant 0 : i32
    return %c0_i32, %c0_i32_0 : i32, i32
  }
  func.func @transform_5(%arg0: i32) -> (i32, i32) {
    %c0_i32 = arith.constant 0 : i32
    %c0_i32_0 = arith.constant 0 : i32
    %c0_i32_1 = arith.constant 0 : i32
    return %c0_i32, %c0_i32_0 : i32, i32
  }
  func.func @transform_6(%arg0: i32) -> (i32, i32) {
    %c0_i32 = arith.constant 0 : i32
    %c0_i32_0 = arith.constant 0 : i32
    %c0_i32_1 = arith.constant 0 : i32
    return %c0_i32, %c0_i32_0 : i32, i32
  }
  func.func @transform_7(%arg0: i32) -> (i32, i32) {
    %c0_i32 = arith.constant 0 : i32
    %c0_i32_0 = arith.constant 0 : i32
    return %arg0, %c0_i32 : i32, i32
  }
}

</mosaic_0001>

<llo_original>
// kernel: tpu_custom_call.1
$region0: #{tpu_custom_call.1}
  #allocation0 [shape = 'u32[]', space=smem, size = 0x4, offset = 0x4, fixed_abs, tag = 'smem constant byte address 0x4 - core index']
  #allocation1 [shape = 'u32[144,128]{1,0:T(1,128)}', space=vmem, size = 0x12000, scoped, tag = 'internal scratch']
  %s0 = inlined_call_operand.vmem [shape: f32[16,8], index: 0, kind: input, shape index: {}]
  %s1 = inlined_call_operand.vmem [shape: f32[16,16], index: 1, kind: input, shape index: {}]
  %s2 = inlined_call_operand.vmem [shape: bf16[8,128], index: 2, kind: input, shape index: {}]
  %s3 = inlined_call_operand.vmem [shape: bf16[16,128], index: 3, kind: input, shape index: {}]
  %s4 = inlined_call_operand.vmem [shape: f32[3,128], index: 4, kind: input, shape index: {}]
  %s5 = inlined_call_operand.hbm [shape: bf16[128,128], index: 5, kind: input, shape index: {}]
  %s6 = inlined_call_operand.hbm [shape: bf16[128,128], index: 6, kind: input, shape index: {}]
  %s7 = inlined_call_operand.hbm [shape: f32[16,128], index: 7, kind: output, shape index: {}]
  %s8 = sld [smem:[#allocation0]]
  $region46: #{tpu_custom_call.1} parent=0
    _
  %s10 = ssub.s32 1, %s8
  %s11 = scalar_select 0, %s10, %s8
  $region1: #{tpu_custom_call.1} parent=0
    #allocation2 [shape = 'u8[32768]{0}', space=vmem, size = 0x8000, scoped, tag = 'input window, operand 5, single buffered']
    #allocation3 [shape = 's32[1]{0}', space=sflag, size = 0x4, scoped, tag = 'scoped memory for tpu_custom_call.1']
    #allocation4 [shape = 's32[1]{0}', space=sflag, size = 0x4, scoped, tag = 'scoped memory for tpu_custom_call.1']
    #allocation5 [shape = 'u8[32768]{0}', space=vmem, size = 0x8000, scoped, tag = 'input window, operand 6, single buffered']
    #allocation6 [shape = 's32[1]{0}', space=sflag, size = 0x4, scoped, tag = 'scoped memory for tpu_custom_call.1']
    #allocation7 [shape = 'u8[8192]{0}', space=vmem, size = 0x2000, scoped, tag = 'output window, operand 0, single buffered']
    %12 = vsyncpa [#allocation3], 0
    %13 = vsyncpa [#allocation6], 0
    %14 = vsyncpa [#allocation4], 0
    // Predicated region
    $region2: #{tpu_custom_call.1} parent=1 // pred_check
      _
    $region3: #{tpu_custom_call.1} parent=1 // pred_check_branch
      %16 = sbr.rel (0) target = $region5
    $region4: #{tpu_custom_call.1} parent=1 // pred_region
      _
    $region5: #{tpu_custom_call.1} parent=1 // pred_fallthru
      _
    // Predicated region
    $region6: #{tpu_custom_call.1} parent=1 // pred_check
      _
    $region7: #{tpu_custom_call.1} parent=1 // pred_check_branch
      %18 = sbr.rel (0) target = $region9
    $region8: #{tpu_custom_call.1} parent=1 // pred_region
      _
    $region9: #{tpu_custom_call.1} parent=1 // pred_fallthru
      _
    // Predicated region
    $region10: #{tpu_custom_call.1} parent=1 // pred_check
      _
    $region11: #{tpu_custom_call.1} parent=1 // pred_check_branch
      %20 = sbr.rel (0) target = $region13
    $region12: #{tpu_custom_call.1} parent=1 // pred_region
      _
    $region13: #{tpu_custom_call.1} parent=1 // pred_fallthru
      _
    // Predicated region
    $region14: #{tpu_custom_call.1} parent=1 // pred_check
      _
    $region15: #{tpu_custom_call.1} parent=1 // pred_check_branch
      %22 = sbr.rel (0) target = $region17
    $region16: #{tpu_custom_call.1} parent=1 // pred_region
      _
    $region17: #{tpu_custom_call.1} parent=1 // pred_fallthru
      _
    // Predicated region
    $region18: #{tpu_custom_call.1} parent=1 // pred_check
      _
    $region19: #{tpu_custom_call.1} parent=1 // pred_check_branch
      %24 = sbr.rel (0) target = $region21
    $region20: #{tpu_custom_call.1} parent=1 // pred_region
      _
    $region21: #{tpu_custom_call.1} parent=1 // pred_fallthru
      _
    // Predicated region
    $region22: #{tpu_custom_call.1} parent=1 // pred_check
      _
    $region23: #{tpu_custom_call.1} parent=1 // pred_check_branch
      %26 = sbr.rel (0) target = $region25
    $region24: #{tpu_custom_call.1} parent=1 // pred_region
      %s28 = ssub.s32 1024, 1024
      %29 = vsyncadd [#allocation3], %s28
      %s30 = sshll.u32 [#allocation2], 4
      %s31 = int_to_ptr.vmem [resolvable:$true] %s30
      %36 = dma.hbm_to_vmem [thread:$0]  %s5, 1024, %s31, [#allocation3], 64, 64, 4
    $region25: #{tpu_custom_call.1} parent=1 // pred_fallthru
      _
    // Predicated region
    $region26: #{tpu_custom_call.1} parent=1 // pred_check
      _
    $region27: #{tpu_custom_call.1} parent=1 // pred_check_branch
      %38 = sbr.rel (0) target = $region29
    $region28: #{tpu_custom_call.1} parent=1 // pred_region
      %s40 = ssub.s32 1024, 1024
      %41 = vsyncadd [#allocation6], %s40
      %s42 = sshll.u32 [#allocation5], 4
      %s43 = int_to_ptr.vmem [resolvable:$true] %s42
      %48 = dma.hbm_to_vmem [thread:$0]  %s6, 1024, %s43, [#allocation6], 64, 64, 4
    $region29: #{tpu_custom_call.1} parent=1 // pred_fallthru
      _
    // Predicated region
    $region30: #{tpu_custom_call.1} parent=1 // pred_check
      _
    $region31: #{tpu_custom_call.1} parent=1 // pred_check_branch
      %50 = sbr.rel (0) target = $region33
    $region32: #{tpu_custom_call.1} parent=1 // pred_region
      %51 = dma.done [#allocation3], 1024
    $region33: #{tpu_custom_call.1} parent=1 // pred_fallthru
      _
    // Predicated region
    $region34: #{tpu_custom_call.1} parent=1 // pred_check
      _
    $region35: #{tpu_custom_call.1} parent=1 // pred_check_branch
      %53 = sbr.rel (0) target = $region37
    $region36: #{tpu_custom_call.1} parent=1 // pred_region
      %54 = dma.done [#allocation6], 1024
    $region37: #{tpu_custom_call.1} parent=1 // pred_fallthru
      _
    %v56 = vld [vmem:[%s4] sm:$0x7]
    %v57 = vld [vmem:[%s0] sm:$0xff]
    %v58 = vld [vmem:[%s0 + $0x8] sm:$0xff]
    %v59 = vpack.c.bf16 %v58, %v57
    %v60 = vld [vmem:[%s1] sm:$0xff]
    %v61 = vld [vmem:[%s1 + $0x8] sm:$0xff]
    %v62 = vpack.c.bf16 %v61, %v60
    %v63 = vld [vmem:[%s2] sm:$0xf]
    %v64 = vld [vmem:[%s3] sm:$0xf]
    %v65 = vld [vmem:[%s3 + $0x4] sm:$0xf]
    %v68 = vunpack.c.l.b16 %v64
    %v69 = vunpack.c.l.b16 %v65
    %v70 = vpack.c.b16 %v69, %v68
    %vm72 = vcmask 130048
    %v74 = vsel %vm72, %v62, 0
    %76 = vmatprep.subr.bf16.mxu0 0
    %77 = vmatpush1.bf16.msra.mxu0 %v70
    %78 = vmatprep.subr.bf16.mxu0 0
    %79 = vmatpush1.bf16.msra.mxu0 0
    %80 = vmatprep.subr.bf16.mxu0 0
    %81 = vmatpush1.bf16.msra.mxu0 0
    %82 = vmatprep.subr.bf16.mxu0 0
    %83 = vmatpush1.bf16.msra.mxu0 0
    %84 = vmatprep.subr.bf16.mxu0 0
    %85 = vmatpush1.bf16.msra.mxu0 0
    %86 = vmatprep.subr.bf16.mxu0 0
    %87 = vmatpush1.bf16.msra.mxu0 0
    %88 = vmatprep.subr.bf16.mxu0 0
    %89 = vmatpush1.bf16.msra.mxu0 0
    %90 = vmatprep.subr.bf16.mxu0 0
    %91 = vmatpush1.bf16.msra.mxu0 0
    %92 = vmatprep.subr.bf16.mxu0 0
    %93 = vmatpush1.bf16.msra.mxu0 0
    %94 = vmatprep.subr.bf16.mxu0 0
    %95 = vmatpush1.bf16.msra.mxu0 0
    %96 = vmatprep.subr.bf16.mxu0 0
    %97 = vmatpush1.bf16.msra.mxu0 0
    %98 = vmatprep.subr.bf16.mxu0 0
    %99 = vmatpush1.bf16.msra.mxu0 0
    %100 = vmatprep.subr.bf16.mxu0 0
    %101 = vmatpush1.bf16.msra.mxu0 0
    %102 = vmatprep.subr.bf16.mxu0 0
    %103 = vmatpush1.bf16.msra.mxu0 0
    %104 = vmatprep.subr.bf16.mxu0 0
    %105 = vmatpush1.bf16.msra.mxu0 0
    %106 = vmatprep.subr.bf16.mxu0 0
    %107 = vmatpush1.bf16.msra.mxu0 0
    %108 = vmatprep.mubr.bf16.mxu0 0
    %109 = vmatmul.mubr.bf16.gmra.mrb[0].mxu0 %v74
    %v110 = vpop.f32.mrb[0].mxu0
    %v111 = vadd.f32 0.0, %v110
    %v112 = vpop.f32.mrb[0].mxu0
    %v113 = vpop.f32.mrb[0].mxu0
    %v114 = vadd.f32 0.0, %v113
    %v115 = vpop.f32.mrb[0].mxu0
    %116 = vdwg.mxu0
    %vm117 = vcmask 64512
    %v119 = vsel %vm117, %v59, 0
    %vm121 = vcmask 1043456
    %v123 = vsel %vm121, %v63, 0
    %125 = vmatprep.subr.bf16.mxu0 0
    %126 = vmatpush1.bf16.msra.mxu0 %v123
    %127 = vmatprep.subr.bf16.mxu0 0
    %128 = vmatpush1.bf16.msra.mxu0 0
    %129 = vmatprep.subr.bf16.mxu0 0
    %130 = vmatpush1.bf16.msra.mxu0 0
    %131 = vmatprep.subr.bf16.mxu0 0
    %132 = vmatpush1.bf16.msra.mxu0 0
    %133 = vmatprep.subr.bf16.mxu0 0
    %134 = vmatpush1.bf16.msra.mxu0 0
    %135 = vmatprep.subr.bf16.mxu0 0
    %136 = vmatpush1.bf16.msra.mxu0 0
    %137 = vmatprep.subr.bf16.mxu0 0
    %138 = vmatpush1.bf16.msra.mxu0 0
    %139 = vmatprep.subr.bf16.mxu0 0
    %140 = vmatpush1.bf16.msra.mxu0 0
    %141 = vmatprep.subr.bf16.mxu0 0
    %142 = vmatpush1.bf16.msra.mxu0 0
    %143 = vmatprep.subr.bf16.mxu0 0
    %144 = vmatpush1.bf16.msra.mxu0 0
    %145 = vmatprep.subr.bf16.mxu0 0
    %146 = vmatpush1.bf16.msra.mxu0 0
    %147 = vmatprep.subr.bf16.mxu0 0
    %148 = vmatpush1.bf16.msra.mxu0 0
    %149 = vmatprep.subr.bf16.mxu0 0
    %150 = vmatpush1.bf16.msra.mxu0 0
    %151 = vmatprep.subr.bf16.mxu0 0
    %152 = vmatpush1.bf16.msra.mxu0 0
    %153 = vmatprep.subr.bf16.mxu0 0
    %154 = vmatpush1.bf16.msra.mxu0 0
    %155 = vmatprep.subr.bf16.mxu0 0
    %156 = vmatpush1.bf16.msra.mxu0 0
    %157 = vmatprep.mubr.bf16.mxu0 0
    %158 = vmatmul.mubr.bf16.gmra.mrb[0].mxu0 %v119
    %v159 = vpop.f32.mrb[0].mxu0
    %v160 = vadd.f32 %v111, %v159
    %v161 = vpop.f32.mrb[0].mxu0
    %v162 = vpop.f32.mrb[0].mxu0
    %v163 = vadd.f32 %v114, %v162
    %v164 = vpop.f32.mrb[0].mxu0
    %165 = vdwg.mxu0
    %v166 = vlaneseq
    %v167 = vshrl.u32 %v166, 7
    %v168 = vsub.s32 0, %v167
    %v169 = vrot.slane %v56, %v168
    %v170 = vadd.f32 %v160, %v169
    %v171 = vadd.f32 %v163, %v169
    %v172 = vtanh.pop %v170
    %v173 = vtanh.pop %v171
    %v174 = vld [vmem:[#allocation2] sm:$0xf]
    %v175 = vld [vmem:[#allocation2 + $0x4] sm:$0xf]
    %v176 = vld [vmem:[#allocation2 + $0x8] sm:$0xf]
    %v177 = vld [vmem:[#allocation2 + $0xc] sm:$0xf]
    %v178 = vld [vmem:[#allocation2 + $0x10] sm:$0xf]
    %v179 = vld [vmem:[#allocation2 + $0x14] sm:$0xf]
    %v180 = vld [vmem:[#allocation2 + $0x18] sm:$0xf]
    %v181 = vld [vmem:[#allocation2 + $0x1c] sm:$0xf]
    %v182 = vld [vmem:[#allocation2 + $0x20] sm:$0xf]
    %v183 = vld [vmem:[#allocation2 + $0x24] sm:$0xf]
    %v184 = vld [vmem:[#allocation2 + $0x28] sm:$0xf]
    %v185 = vld [vmem:[#allocation2 + $0x2c] sm:$0xf]
    %v186 = vld [vmem:[#allocation2 + $0x30] sm:$0xf]
    %v187 = vld [vmem:[#allocation2 + $0x34] sm:$0xf]
    %v188 = vld [vmem:[#allocation2 + $0x38] sm:$0xf]
    %v189 = vld [vmem:[#allocation2 + $0x3c] sm:$0xf]
    %v190 = vpack.c.bf16 %v173, %v172
    %v191 = vlaneseq
    %v192 = vshrl.u32 %v191, 7
    %v193 = vsub.s32 1, %v192
    %v194 = vrot.slane %v56, %v193
    %v211 = vunpack.c.l.b16 %v174
    %v212 = vunpack.c.l.b16 %v175
    %v213 = vunpack.c.l.b16 %v176
    %v214 = vunpack.c.l.b16 %v177
    %v215 = vunpack.c.l.b16 %v178
    %v216 = vunpack.c.l.b16 %v179
    %v217 = vunpack.c.l.b16 %v180
    %v218 = vunpack.c.l.b16 %v181
    %v219 = vunpack.c.l.b16 %v182
    %v220 = vunpack.c.l.b16 %v183
    %v221 = vunpack.c.l.b16 %v184
    %v222 = vunpack.c.l.b16 %v185
    %v223 = vunpack.c.l.b16 %v186
    %v224 = vunpack.c.l.b16 %v187
    %v225 = vunpack.c.l.b16 %v188
    %v226 = vunpack.c.l.b16 %v189
    %v227 = vpack.c.b16 %v212, %v211
    %v228 = vpack.c.b16 %v214, %v213
    %v229 = vpack.c.b16 %v216, %v215
    %v230 = vpack.c.b16 %v218, %v217
    %v231 = vpack.c.b16 %v220, %v219
    %v232 = vpack.c.b16 %v222, %v221
    %v233 = vpack.c.b16 %v224, %v223
    %v234 = vpack.c.b16 %v226, %v225
    %243 = vmatprep.subr.bf16.mxu0 0
    %244 = vmatpush1.bf16.msra.mxu0 %v227
    %245 = vmatprep.subr.bf16.mxu0 0
    %246 = vmatpush1.bf16.msra.mxu0 %v228
    %247 = vmatprep.subr.bf16.mxu0 0
    %248 = vmatpush1.bf16.msra.mxu0 %v229
    %249 = vmatprep.subr.bf16.mxu0 0
    %250 = vmatpush1.bf16.msra.mxu0 %v230
    %251 = vmatprep.subr.bf16.mxu0 0
    %252 = vmatpush1.bf16.msra.mxu0 %v231
    %253 = vmatprep.subr.bf16.mxu0 0
    %254 = vmatpush1.bf16.msra.mxu0 %v232
    %255 = vmatprep.subr.bf16.mxu0 0
    %256 = vmatpush1.bf16.msra.mxu0 %v233
    %257 = vmatprep.subr.bf16.mxu0 0
    %258 = vmatpush1.bf16.msra.mxu0 %v234
    %259 = vmatprep.subr.bf16.mxu0 0
    %260 = vmatpush1.bf16.msra.mxu0 0
    %261 = vmatprep.subr.bf16.mxu0 0
    %262 = vmatpush1.bf16.msra.mxu0 0
    %263 = vmatprep.subr.bf16.mxu0 0
    %264 = vmatpush1.bf16.msra.mxu0 0
    %265 = vmatprep.subr.bf16.mxu0 0
    %266 = vmatpush1.bf16.msra.mxu0 0
    %267 = vmatprep.subr.bf16.mxu0 0
    %268 = vmatpush1.bf16.msra.mxu0 0
    %269 = vmatprep.subr.bf16.mxu0 0
    %270 = vmatpush1.bf16.msra.mxu0 0
    %271 = vmatprep.subr.bf16.mxu0 0
    %272 = vmatpush1.bf16.msra.mxu0 0
    %273 = vmatprep.subr.bf16.mxu0 0
    %274 = vmatpush1.bf16.msra.mxu0 0
    %275 = vmatprep.mubr.bf16.mxu0 0
    %276 = vmatmul.mubr.bf16.gmra.mrb[0].mxu0 %v190
    %v277 = vpop.f32.mrb[0].mxu0
    %v278 = vadd.f32 %v194, %v277
    %v279 = vpop.f32.mrb[0].mxu0
    %v280 = vpop.f32.mrb[0].mxu0
    %v281 = vadd.f32 %v194, %v280
    %v282 = vpop.f32.mrb[0].mxu0
    %283 = vdwg.mxu0
    %v284 = vtanh.pop %v278
    %v285 = vtanh.pop %v281
    %v286 = vld [vmem:[#allocation5] sm:$0xf]
    %v287 = vld [vmem:[#allocation5 + $0x4] sm:$0xf]
    %v288 = vld [vmem:[#allocation5 + $0x8] sm:$0xf]
    %v289 = vld [vmem:[#allocation5 + $0xc] sm:$0xf]
    %v290 = vld [vmem:[#allocation5 + $0x10] sm:$0xf]
    %v291 = vld [vmem:[#allocation5 + $0x14] sm:$0xf]
    %v292 = vld [vmem:[#allocation5 + $0x18] sm:$0xf]
    %v293 = vld [vmem:[#allocation5 + $0x1c] sm:$0xf]
    %v294 = vld [vmem:[#allocation5 + $0x20] sm:$0xf]
    %v295 = vld [vmem:[#allocation5 + $0x24] sm:$0xf]
    %v296 = vld [vmem:[#allocation5 + $0x28] sm:$0xf]
    %v297 = vld [vmem:[#allocation5 + $0x2c] sm:$0xf]
    %v298 = vld [vmem:[#allocation5 + $0x30] sm:$0xf]
    %v299 = vld [vmem:[#allocation5 + $0x34] sm:$0xf]
    %v300 = vld [vmem:[#allocation5 + $0x38] sm:$0xf]
    %v301 = vld [vmem:[#allocation5 + $0x3c] sm:$0xf]
    %v302 = vpack.c.bf16 %v285, %v284
    %v303 = vlaneseq
    %v304 = vshrl.u32 %v303, 7
    %v305 = vsub.s32 2, %v304
    %v306 = vrot.slane %v56, %v305
    %v323 = vunpack.c.l.b16 %v286
    %v324 = vunpack.c.l.b16 %v287
    %v325 = vunpack.c.l.b16 %v288
    %v326 = vunpack.c.l.b16 %v289
    %v327 = vunpack.c.l.b16 %v290
    %v328 = vunpack.c.l.b16 %v291
    %v329 = vunpack.c.l.b16 %v292
    %v330 = vunpack.c.l.b16 %v293
    %v331 = vunpack.c.l.b16 %v294
    %v332 = vunpack.c.l.b16 %v295
    %v333 = vunpack.c.l.b16 %v296
    %v334 = vunpack.c.l.b16 %v297
    %v335 = vunpack.c.l.b16 %v298
    %v336 = vunpack.c.l.b16 %v299
    %v337 = vunpack.c.l.b16 %v300
    %v338 = vunpack.c.l.b16 %v301
    %v339 = vpack.c.b16 %v324, %v323
    %v340 = vpack.c.b16 %v326, %v325
    %v341 = vpack.c.b16 %v328, %v327
    %v342 = vpack.c.b16 %v330, %v329
    %v343 = vpack.c.b16 %v332, %v331
    %v344 = vpack.c.b16 %v334, %v333
    %v345 = vpack.c.b16 %v336, %v335
    %v346 = vpack.c.b16 %v338, %v337
    %355 = vmatprep.subr.bf16.mxu0 0
    %356 = vmatpush1.bf16.msra.mxu0 %v339
    %357 = vmatprep.subr.bf16.mxu0 0
    %358 = vmatpush1.bf16.msra.mxu0 %v340
    %359 = vmatprep.subr.bf16.mxu0 0
    %360 = vmatpush1.bf16.msra.mxu0 %v341
    %361 = vmatprep.subr.bf16.mxu0 0
    %362 = vmatpush1.bf16.msra.mxu0 %v342
    %363 = vmatprep.subr.bf16.mxu0 0
    %364 = vmatpush1.bf16.msra.mxu0 %v343
    %365 = vmatprep.subr.bf16.mxu0 0
    %366 = vmatpush1.bf16.msra.mxu0 %v344
    %367 = vmatprep.subr.bf16.mxu0 0
    %368 = vmatpush1.bf16.msra.mxu0 %v345
    %369 = vmatprep.subr.bf16.mxu0 0
    %370 = vmatpush1.bf16.msra.mxu0 %v346
    %371 = vmatprep.subr.bf16.mxu0 0
    %372 = vmatpush1.bf16.msra.mxu0 0
    %373 = vmatprep.subr.bf16.mxu0 0
    %374 = vmatpush1.bf16.msra.mxu0 0
    %375 = vmatprep.subr.bf16.mxu0 0
    %376 = vmatpush1.bf16.msra.mxu0 0
    %377 = vmatprep.subr.bf16.mxu0 0
    %378 = vmatpush1.bf16.msra.mxu0 0
    %379 = vmatprep.subr.bf16.mxu0 0
    %380 = vmatpush1.bf16.msra.mxu0 0
    %381 = vmatprep.subr.bf16.mxu0 0
    %382 = vmatpush1.bf16.msra.mxu0 0
    %383 = vmatprep.subr.bf16.mxu0 0
    %384 = vmatpush1.bf16.msra.mxu0 0
    %385 = vmatprep.subr.bf16.mxu0 0
    %386 = vmatpush1.bf16.msra.mxu0 0
    %387 = vmatprep.mubr.bf16.mxu0 0
    %388 = vmatmul.mubr.bf16.gmra.mrb[0].mxu0 %v302
    %v389 = vpop.f32.mrb[0].mxu0
    %v390 = vadd.f32 %v306, %v389
    %v391 = vpop.f32.mrb[0].mxu0
    %v392 = vpop.f32.mrb[0].mxu0
    %v393 = vadd.f32 %v306, %v392
    %v394 = vpop.f32.mrb[0].mxu0
    %395 = vdwg.mxu0
    %v396 = vtanh.pop %v390
    %v397 = vtanh.pop %v393
    %398 = vst [vmem:[#allocation7] sm:$0xff] %v396
    %399 = vst [vmem:[#allocation7 + $0x8] sm:$0xff] %v397
    // Predicated region
    $region38: #{tpu_custom_call.1} parent=1 // pred_check
      _
    $region39: #{tpu_custom_call.1} parent=1 // pred_check_branch
      %401 = sbr.rel (0) target = $region41
    $region40: #{tpu_custom_call.1} parent=1 // pred_region
      %s403 = ssub.s32 256, 256
      %404 = vsyncadd [#allocation4], %s403
      %s405 = sshll.u32 [#allocation7], 4
      %s406 = int_to_ptr.vmem [resolvable:$true] %s405
      %411 = dma.vmem_to_hbm [thread:$0]  %s406, 256, %s7, [#allocation4], 128, 128, 8
    $region41: #{tpu_custom_call.1} parent=1 // pred_fallthru
      _
    // Predicated region
    $region42: #{tpu_custom_call.1} parent=1 // pred_check
      _
    $region43: #{tpu_custom_call.1} parent=1 // pred_check_branch
      %413 = sbr.rel (0) target = $region45
    $region44: #{tpu_custom_call.1} parent=1 // pred_region
      %414 = dma.done [#allocation4], 256
    $region45: #{tpu_custom_call.1} parent=1 // pred_fallthru
      _
    %415 = vsyncpa [#allocation3], 1
    %416 = vsyncpa [#allocation6], 1
    %417 = vsyncpa [#allocation4], 1

</llo_original>
